<compile_context>
chip_gen: v7x
topology: tpu7x:2x2x1
jax: 0.10.0
libtpu: 0.0.40
codegen_flags: <defaults>
</compile_context>

<pallas_src>
import functools
import math

import jax
import jax.numpy as jnp
import numpy as np
from jax.experimental import pallas as pl
from jax.experimental.pallas import tpu as pltpu


def _split_channels(num_chan, num_groups):
    split = [num_chan // num_groups for _ in range(num_groups)]
    split[0] += num_chan - sum(split)
    return split


def _get_padding(kernel_size, stride=1, dilation=1):
    # conv2d_pad path for padding='' (static pad; stride==1, dilation==1 here)
    return (stride - 1 + dilation * (kernel_size - 1)) // 2


def _pick_batch_tile(n, ho, target_m=256):
    """Images per grid step: fill the MXU M dimension (~128-256 rows) but keep
    >=2 grid steps when possible (v7x megacore + pipeline steady state)."""
    divisors = [d for d in range(1, n + 1) if n % d == 0]
    fits = [d for d in divisors if d * ho <= target_m] or [1]
    multi_step = [d for d in fits if n // d >= 2]
    return max(multi_step) if multi_step else max(fits)


def _build_toeplitz_weights(weights, in_splits, out_splits, pads, W, Wo,
                            kh_total, pad_top, dtype):
    """Host-side (one-time) expansion of all groups' HWIO weights into the fused
    block-Toeplitz matrix B[(kh, w_in, cin), (wo, cout)] so that, with A' the
    KH-im2col of the H-zero-padded activations of one image,

        out[ho, wo*Cout + cout] = A'[ho, :] @ B

    reproduces every group's 'same'-padded conv ('same' W padding and the group
    channel offsets are folded into B; unused taps stay zero)."""
    cin_total = sum(in_splits)
    cout_total = sum(out_splits)
    b = np.zeros((kh_total, W * cin_total, Wo * cout_total), np.float32)
    cin_off = 0
    cout_off = 0
    for wg, cin_g, cout_g, p in zip(weights, in_splits, out_splits, pads):
        wg = np.asarray(wg, np.float32)            # (k, k, cin_g, cout_g) HWIO
        k = wg.shape[0]
        for kh in range(kh_total):
            kh_g = kh - pad_top + p                # group-local vertical tap
            if not (0 <= kh_g < k):
                continue
            for wo in range(Wo):
                for kw_g in range(k):
                    w_in = wo + kw_g - p           # input column read by this tap
                    if not (0 <= w_in < W):
                        continue                   # 'same' W-padding -> stays zero
                    r0 = w_in * cin_total + cin_off
                    c0 = wo * cout_total + cout_off
                    b[kh, r0:r0 + cin_g, c0:c0 + cout_g] = wg[kh_g, kw_g]
        cin_off += cin_g
        cout_off += cout_g
    b = b.reshape(kh_total * W * cin_total, Wo * cout_total)
    return jnp.asarray(b, dtype=dtype)


def _mixed_conv_kernel(x_ref, b_ref, o_ref, a_ref, *, pad_top, kh_total):
    """Nb images of the fused MixedConv, single MXU contraction.

    x_ref: (Nb, H, W*Cin)            activations, already in compute dtype
    b_ref: (KH*W*Cin, Wo*Cout)       fused block-Toeplitz weights (all groups)
    o_ref: (Nb, Ho, Wo*Cout)         lane-dense output slab
    a_ref: (Nb*Ho, KH*W*Cin)         VMEM scratch: im2col over the KH taps
    """
    nb, h, wcin = x_ref.shape
    ho = o_ref.shape[1]

    # Assemble A'[n*Ho + ho, kh*WCin + j] = xpad[n, ho + kh, j] with xpad the
    # H-zero-padded image.  Only the halo rows (where ho + kh - pad_top falls
    # outside [0, H)) are zeroed; interior rows are written directly from x_ref.
    # Zeroing happens every step (scratch is per-TensorCore under "parallel").
    for n in range(nb):
        r0 = n * ho
        for kh in range(kh_total):
            c0 = kh * wcin
            lo = max(0, pad_top - kh)            # first valid output row for this tap
            hi = min(ho, h + pad_top - kh)       # one past the last valid output row
            if lo > 0:
                a_ref[r0:r0 + lo, c0:c0 + wcin] = jnp.zeros((lo, wcin), a_ref.dtype)
            if hi < ho:
                a_ref[r0 + hi:r0 + ho, c0:c0 + wcin] = (
                    jnp.zeros((ho - hi, wcin), a_ref.dtype))
            a_ref[r0 + lo:r0 + hi, c0:c0 + wcin] = (
                x_ref[n, lo + kh - pad_top:hi + kh - pad_top, :])

    # One MXU matmul: (Nb*Ho, KH*W*Cin) @ (KH*W*Cin, Wo*Cout), f32 accumulation.
    acc = jnp.dot(a_ref[...], b_ref[...], preferred_element_type=jnp.float32)
    for n in range(nb):                          # split back per image (no reshape)
        o_ref[n] = acc[n * ho:(n + 1) * ho, :].astype(o_ref.dtype)


class MixedConv2dPallas:
    """Pallas port of MixedConv2d with module defaults:
    padding='' (static same pad), stride=1, dilated=False, depthwise=False, bias=False."""

    def __init__(self, key, in_channels, out_channels, kernel_size=3,
                 stride=1, padding='', dilated=False, depthwise=False,
                 compute_dtype=jnp.bfloat16):
        assert stride == 1 and not dilated and not depthwise and padding == ''
        # TODO(synk): stride>1 / dilated / depthwise / Conv2dSame dynamic-pad branches
        # of conv2d_pad are not exercised by the default config and are not implemented.
        kernel_size = kernel_size if isinstance(kernel_size, list) else [kernel_size]
        for k in kernel_size:
            # TODO(synk): even kernel sizes shrink spatial dims under static pad and the
            # per-group outputs could not be concatenated; restricted to odd kernels.
            assert k % 2 == 1, "only odd kernel sizes supported"
        num_groups = len(kernel_size)
        self.kernel_sizes = kernel_size
        self.in_splits = _split_channels(in_channels, num_groups)
        self.out_splits = _split_channels(out_channels, num_groups)
        self.pads = [_get_padding(k, stride, 1) for k in kernel_size]
        self.pad_top = max(self.pads)
        self.kh_total = max(self.pad_top - p + k
                            for k, p in zip(kernel_size, self.pads))
        self.in_channels = in_channels
        self.out_channels = out_channels
        self.compute_dtype = compute_dtype

        keys = jax.random.split(key, num_groups)
        self.weights = []
        for kk, k, cin, cout in zip(keys, kernel_size, self.in_splits, self.out_splits):
            bound = 1.0 / math.sqrt(cin * k * k)   # nn.Conv2d default init bound
            w = jax.random.uniform(kk, (k, k, cin, cout), jnp.float32,
                                   minval=-bound, maxval=bound)
            # Snap to bf16-representable values: bf16 compute then produces exactly
            # the same per-tap products as the f32 XLA reference (only summation
            # order differs); distribution unchanged to ~3 decimal digits.
            self.weights.append(w.astype(jnp.bfloat16).astype(jnp.float32))
        self._b_cache = {}

    def _toeplitz_b(self, W):
        key = (W, np.dtype(self.compute_dtype).name)
        if key not in self._b_cache:
            self._b_cache[key] = _build_toeplitz_weights(
                self.weights, self.in_splits, self.out_splits, self.pads,
                W, W, self.kh_total, self.pad_top, self.compute_dtype)
        return self._b_cache[key]

    def __call__(self, x_nchw):
        N, C, H, W = x_nchw.shape
        assert C == self.in_channels
        Ho, Wo = H, W                         # odd kernels + static 'same' pad
        Cout = self.out_channels
        KH = self.kh_total
        b = self._toeplitz_b(W)

        # NCHW -> (N, H, W*Cin): one fused XLA transpose (required only by the NCHW
        # public interface); the minor-dim merge is free.  The compute-dtype cast is
        # hoisted here so the x HBM->VMEM DMA moves bf16 bytes, not f32.
        xr = (jnp.transpose(x_nchw, (0, 2, 3, 1))
              .reshape(N, H, W * C).astype(self.compute_dtype))

        Nb = _pick_batch_tile(N, Ho)          # images per grid step (fills MXU M)
        grid = (N // Nb,)

        # vmem_limit sized to the actual blocks (double-buffered inputs/outputs +
        # the im2col scratch), padded to (8,128) tiles, with generous headroom.
        def _padded_elems(r, c):
            return ((r + 7) // 8 * 8) * ((c + 127) // 128 * 128)
        cbytes = np.dtype(self.compute_dtype).itemsize
        obytes = np.dtype(x_nchw.dtype).itemsize
        block_bytes = (2 * _padded_elems(Nb * H, W * C) * cbytes
                       + 2 * _padded_elems(KH * W * C, Wo * Cout) * cbytes
                       + 2 * _padded_elems(Nb * Ho, Wo * Cout) * obytes
                       + _padded_elems(Nb * Ho, KH * W * C) * cbytes)
        vmem_limit = int(min(100 * 2**20, max(16 * 2**20, 2 * block_bytes)))

        kern = functools.partial(_mixed_conv_kernel,
                                 pad_top=self.pad_top, kh_total=KH)
        out = pl.pallas_call(
            kern,
            out_shape=jax.ShapeDtypeStruct((N, Ho, Wo * Cout), x_nchw.dtype),
            grid=grid,
            in_specs=[
                pl.BlockSpec((Nb, H, W * C), lambda n: (n, 0, 0)),
                pl.BlockSpec((KH * W * C, Wo * Cout), lambda n: (0, 0)),
            ],
            out_specs=pl.BlockSpec((Nb, Ho, Wo * Cout), lambda n: (n, 0, 0)),
            scratch_shapes=[pltpu.VMEM((Nb * Ho, KH * W * C), self.compute_dtype)],
            compiler_params=pltpu.CompilerParams(
                dimension_semantics=("parallel",),   # v7x: 2 TCs split the grid
                vmem_limit_bytes=vmem_limit),
        )(xr, b)

        # (N, Ho, Wo*Cout) -> NCHW: minor-dim split is free, one XLA transpose back.
        return out.reshape(N, Ho, Wo, Cout).transpose(0, 3, 1, 2)


def _reference(x_nchw, module):
    """Pure-JAX reference (XLA conv) for correctness checking."""
    idx, s = [], 0
    for c in module.in_splits[:-1]:
        s += c
        idx.append(s)
    x_parts = jnp.split(x_nchw, idx, axis=1) if idx else [x_nchw]
    outs = []
    for xp, w_hwio, p in zip(x_parts, module.weights, module.pads):
        w_oihw = jnp.transpose(w_hwio, (3, 2, 0, 1))
        o = jax.lax.conv_general_dilated(
            xp, w_oihw, window_strides=(1, 1), padding=[(p, p), (p, p)],
            dimension_numbers=('NCHW', 'OIHW', 'NCHW'))
        outs.append(o)
    return jnp.concatenate(outs, axis=1)


if __name__ == "__main__":
    key = jax.random.PRNGKey(0)
    k_x, k_w = jax.random.split(key)
    N, C_in, H, W = 2, 4, 16, 16
    C_out = 8
    x = jax.random.normal(k_x, (N, C_in, H, W), dtype=jnp.float32)
    # Snap activations to bf16-representable f32 so bf16 compute (MXU operands)
    # and the f32 XLA reference produce identical per-tap products.
    x = x.astype(jnp.bfloat16).astype(jnp.float32)

    module = MixedConv2dPallas(k_w, C_in, C_out, kernel_size=[3, 5])
    y = jax.block_until_ready(module(x))

    y_ref = jax.block_until_ready(_reference(x, module))
    assert y.shape == (N, C_out, H, W), y.shape
    err = float(jnp.max(jnp.abs(y - y_ref)))
    assert jnp.allclose(y, y_ref, atol=1e-4, rtol=1e-4), err
    print("KERNEL_OK")
</pallas_src>

<mosaic_0001>
module attributes {stable_mosaic.version = 11 : i64} {
  func.func @_mixed_conv_kernel(%arg0: i32, %arg1: memref<1x16x64xbf16, #tpu.memory_space<vmem>>, %arg2: memref<320x128xbf16, #tpu.memory_space<vmem>>, %arg3: memref<1x16x128xf32, #tpu.memory_space<vmem>>, %arg4: memref<16x320xbf16, #tpu.memory_space<vmem>>) attributes {dimension_semantics = [#tpu.dimension_semantics<parallel>], iteration_bounds = array<i64: 2>, scalar_prefetch = 0 : i64, scratch_operands = 1 : i64, tpu.core_type = #tpu.core_type<tc>, window_params = [{transform_indices = @transform_0, window_bounds = array<i64: 1, 16, 64>}, {pipeline_mode = #tpu.pipeline_mode<synchronous>, transform_indices = @transform_1, window_bounds = array<i64: 320, 128>}, {transform_indices = @transform_2, window_bounds = array<i64: 1, 16, 128>}]} {
    %cst = arith.constant 0.000000e+00 : bf16
    %0 = vector.broadcast %cst : bf16 to vector<2x64xbf16>
    %c0 = arith.constant 0 : index
    %c0_0 = arith.constant 0 : index
    %1 = vector.load %arg4[%c0, %c0_0] : memref<16x320xbf16, #tpu.memory_space<vmem>>, vector<2x64xbf16>
    tpu.vector_store %arg4[%c0, %c0_0], %0 {strides = array<i32>} : memref<16x320xbf16, #tpu.memory_space<vmem>>, vector<2x64xbf16>,
    %c0_1 = arith.constant 0 : index
    %c0_2 = arith.constant 0 : index
    %c0_3 = arith.constant 0 : index
    %2 = vector.load %arg1[%c0_1, %c0_2, %c0_3] : memref<1x16x64xbf16, #tpu.memory_space<vmem>>, vector<1x14x64xbf16>
    %3 = vector.shape_cast %2 : vector<1x14x64xbf16> to vector<14x64xbf16>
    %c2 = arith.constant 2 : index
    %c0_4 = arith.constant 0 : index
    %4 = vector.load %arg4[%c2, %c0_4] : memref<16x320xbf16, #tpu.memory_space<vmem>>, vector<14x64xbf16>
    tpu.vector_store %arg4[%c2, %c0_4], %3 {strides = array<i32>} : memref<16x320xbf16, #tpu.memory_space<vmem>>, vector<14x64xbf16>,
    %cst_5 = arith.constant 0.000000e+00 : bf16
    %5 = vector.broadcast %cst_5 : bf16 to vector<1x64xbf16>
    %c0_6 = arith.constant 0 : index
    %c64 = arith.constant 64 : index
    %6 = vector.load %arg4[%c0_6, %c64] : memref<16x320xbf16, #tpu.memory_space<vmem>>, vector<1x64xbf16>
    tpu.vector_store %arg4[%c0_6, %c64], %5 {strides = array<i32>} : memref<16x320xbf16, #tpu.memory_space<vmem>>, vector<1x64xbf16>,
    %c0_7 = arith.constant 0 : index
    %c0_8 = arith.constant 0 : index
    %c0_9 = arith.constant 0 : index
    %7 = vector.load %arg1[%c0_7, %c0_8, %c0_9] : memref<1x16x64xbf16, #tpu.memory_space<vmem>>, vector<1x15x64xbf16>
    %8 = vector.shape_cast %7 : vector<1x15x64xbf16> to vector<15x64xbf16>
    %c1 = arith.constant 1 : index
    %c64_10 = arith.constant 64 : index
    %9 = vector.load %arg4[%c1, %c64_10] : memref<16x320xbf16, #tpu.memory_space<vmem>>, vector<15x64xbf16>
    tpu.vector_store %arg4[%c1, %c64_10], %8 {strides = array<i32>} : memref<16x320xbf16, #tpu.memory_space<vmem>>, vector<15x64xbf16>,
    %c0_11 = arith.constant 0 : index
    %c0_12 = arith.constant 0 : index
    %c0_13 = arith.constant 0 : index
    %10 = vector.load %arg1[%c0_11, %c0_12, %c0_13] : memref<1x16x64xbf16, #tpu.memory_space<vmem>>, vector<1x16x64xbf16>
    %11 = vector.shape_cast %10 : vector<1x16x64xbf16> to vector<16x64xbf16>
    %c0_14 = arith.constant 0 : index
    %c128 = arith.constant 128 : index
    %12 = vector.load %arg4[%c0_14, %c128] : memref<16x320xbf16, #tpu.memory_space<vmem>>, vector<16x64xbf16>
    tpu.vector_store %arg4[%c0_14, %c128], %11 {strides = array<i32>} : memref<16x320xbf16, #tpu.memory_space<vmem>>, vector<16x64xbf16>,
    %cst_15 = arith.constant 0.000000e+00 : bf16
    %13 = vector.broadcast %cst_15 : bf16 to vector<1x64xbf16>
    %c15 = arith.constant 15 : index
    %c192 = arith.constant 192 : index
    %14 = vector.load %arg4[%c15, %c192] : memref<16x320xbf16, #tpu.memory_space<vmem>>, vector<1x64xbf16>
    tpu.vector_store %arg4[%c15, %c192], %13 {strides = array<i32>} : memref<16x320xbf16, #tpu.memory_space<vmem>>, vector<1x64xbf16>,
    %c0_16 = arith.constant 0 : index
    %c1_17 = arith.constant 1 : index
    %c0_18 = arith.constant 0 : index
    %15 = vector.load %arg1[%c0_16, %c1_17, %c0_18] : memref<1x16x64xbf16, #tpu.memory_space<vmem>>, vector<1x15x64xbf16>
    %16 = vector.shape_cast %15 : vector<1x15x64xbf16> to vector<15x64xbf16>
    %c0_19 = arith.constant 0 : index
    %c192_20 = arith.constant 192 : index
    %17 = vector.load %arg4[%c0_19, %c192_20] : memref<16x320xbf16, #tpu.memory_space<vmem>>, vector<15x64xbf16>
    tpu.vector_store %arg4[%c0_19, %c192_20], %16 {strides = array<i32>} : memref<16x320xbf16, #tpu.memory_space<vmem>>, vector<15x64xbf16>,
    %cst_21 = arith.constant 0.000000e+00 : bf16
    %18 = vector.broadcast %cst_21 : bf16 to vector<2x64xbf16>
    %c14 = arith.constant 14 : index
    %c256 = arith.constant 256 : index
    %19 = vector.load %arg4[%c14, %c256] : memref<16x320xbf16, #tpu.memory_space<vmem>>, vector<2x64xbf16>
    tpu.vector_store %arg4[%c14, %c256], %18 {strides = array<i32>} : memref<16x320xbf16, #tpu.memory_space<vmem>>, vector<2x64xbf16>,
    %c0_22 = arith.constant 0 : index
    %c2_23 = arith.constant 2 : index
    %c0_24 = arith.constant 0 : index
    %20 = vector.load %arg1[%c0_22, %c2_23, %c0_24] : memref<1x16x64xbf16, #tpu.memory_space<vmem>>, vector<1x14x64xbf16>
    %21 = vector.shape_cast %20 : vector<1x14x64xbf16> to vector<14x64xbf16>
    %c0_25 = arith.constant 0 : index
    %c256_26 = arith.constant 256 : index
    %22 = vector.load %arg4[%c0_25, %c256_26] : memref<16x320xbf16, #tpu.memory_space<vmem>>, vector<14x64xbf16>
    tpu.vector_store %arg4[%c0_25, %c256_26], %21 {strides = array<i32>} : memref<16x320xbf16, #tpu.memory_space<vmem>>, vector<14x64xbf16>,
    %c0_27 = arith.constant 0 : index
    %c0_28 = arith.constant 0 : index
    %23 = vector.load %arg4[%c0_27, %c0_28] : memref<16x320xbf16, #tpu.memory_space<vmem>>, vector<16x320xbf16>
    %c0_29 = arith.constant 0 : index
    %c0_30 = arith.constant 0 : index
    %24 = vector.load %arg2[%c0_29, %c0_30] : memref<320x128xbf16, #tpu.memory_space<vmem>>, vector<320x128xbf16>
    %cst_31 = arith.constant dense<0.000000e+00> : vector<16x128xf32>
    %25 = tpu.matmul %23, %24, %cst_31 {dimension_numbers = #tpu.dot_dimension_numbers<[1], [0], [0], [1], [0, 0, 1, 1], [], []>} : vector<16x320xbf16>, vector<320x128xbf16>, vector<16x128xf32> -> vector<16x128xf32>
    %c0_32 = arith.constant 0 : index
    %c0_33 = arith.constant 0 : index
    %c0_34 = arith.constant 0 : index
    %26 = vector.load %arg3[%c0_32, %c0_33, %c0_34] : memref<1x16x128xf32, #tpu.memory_space<vmem>>, vector<1x16x128xf32>
    %27 = vector.shape_cast %26 : vector<1x16x128xf32> to vector<16x128xf32>
    %28 = vector.shape_cast %25 : vector<16x128xf32> to vector<1x16x128xf32>
    tpu.vector_store %arg3[%c0_32, %c0_33, %c0_34], %28 {strides = array<i32>} : memref<1x16x128xf32, #tpu.memory_space<vmem>>, vector<1x16x128xf32>,
    return
  }
  func.func @transform_0(%arg0: i32) -> (i32, i32, i32) {
    %c0_i32 = arith.constant 0 : i32
    %c0_i32_0 = arith.constant 0 : i32
    %c0_i32_1 = arith.constant 0 : i32
    return %arg0, %c0_i32, %c0_i32_0 : i32, i32, i32
  }
  func.func @transform_1(%arg0: i32) -> (i32, i32) {
    %c0_i32 = arith.constant 0 : i32
    %c0_i32_0 = arith.constant 0 : i32
    %c0_i32_1 = arith.constant 0 : i32
    return %c0_i32, %c0_i32_0 : i32, i32
  }
  func.func @transform_2(%arg0: i32) -> (i32, i32, i32) {
    %c0_i32 = arith.constant 0 : i32
    %c0_i32_0 = arith.constant 0 : i32
    %c0_i32_1 = arith.constant 0 : i32
    return %arg0, %c0_i32, %c0_i32_0 : i32, i32, i32
  }
}

</mosaic_0001>

<llo_original>
// kernel: tpu_custom_call.1
$region0: #{tpu_custom_call.1}
  #allocation0 [shape = 'u32[]', space=smem, size = 0x4, offset = 0x4, fixed_abs, tag = 'smem constant byte address 0x4 - core index']
  #allocation1 [shape = 'u32[144,128]{1,0:T(1,128)}', space=vmem, size = 0x12000, scoped, tag = 'internal scratch']
  #allocation2 [shape = 'bf16[16,320]{1,0:T(16,128)(2,1)}', space=vmem, size = 0x3000, scoped, tag = 'scratch operand']
  %s0 = inlined_call_operand.hbm [shape: bf16[2,16,64], index: 0, kind: input, shape index: {}]
  %s1 = inlined_call_operand.hbm [shape: bf16[320,128], index: 1, kind: input, shape index: {}]
  %s2 = inlined_call_operand.hbm [shape: f32[2,16,128], index: 2, kind: output, shape index: {}]
  %s3 = sld [smem:[#allocation0]]
  $region49: #{tpu_custom_call.1} parent=0
    _
  %s5 = ssub.s32 1, %s3
  %s6 = scalar_select 0, %s5, %s3
  $region1: #{tpu_custom_call.1} parent=0
    #allocation3 [shape = 'u8[8192]{0}', space=vmem, size = 0x2000, scoped, tag = 'input window, operand 0']
    #allocation4 [shape = 's32[2]{0}', space=sflag, size = 0x8, scoped, tag = 'scoped memory for tpu_custom_call.1']
    #allocation5 [shape = 's32[2]{0}', space=sflag, size = 0x8, scoped, tag = 'scoped memory for tpu_custom_call.1']
    #allocation6 [shape = 'u8[81920]{0}', space=vmem, size = 0x14000, scoped, tag = 'input window, operand 1, single buffered']
    #allocation7 [shape = 's32[1]{0}', space=sflag, size = 0x4, scoped, tag = 'scoped memory for tpu_custom_call.1']
    #allocation8 [shape = 'u8[16384]{0}', space=vmem, size = 0x4000, scoped, tag = 'output window, operand 0']
    %7 = vsyncpa [#allocation4], 0
    %s8 = scalar_lea.sflag [#allocation4], 1
    %9 = vsyncpa %s8, 0
    %10 = vsyncpa [#allocation7], 0
    %11 = vsyncpa [#allocation5], 0
    %s12 = scalar_lea.sflag [#allocation5], 1
    %13 = vsyncpa %s12, 0
    loop: start=0, step=1, limit=4
    $region2: #{tpu_custom_call.1} parent=1 // loop_pre_header
      _
    $region3: #{tpu_custom_call.1} parent=1 // loop_header
      %s15 = sphi 0, %s19
      %p16 = scmp.ge.s32.totalorder %s15, 4
      %s25 = sphi 0, %s27
      %s28 = sphi 0, %s25
      %s29 = sphi 0, %s28
      %s45 = sphi 0, %s29
      %s49 = sphi 0, %s49
      %s51 = sphi 0, %s49
      %s52 = sphi 0, %s51
      %s66 = sphi 0, %s52
      %s72 = sphi 0, %s74
      %s75 = sphi 0, %s72
      %s76 = sphi 0, %s75
      %s92 = sphi 0, %s76
    $region4: #{tpu_custom_call.1} parent=1 // loop_header_branch
      %18 = sbr.rel (%p16) target = $region8
    $region5: #{tpu_custom_call.1} parent=1 // loop_body
      %s20 = ssub.s32 %s15, 1
      %s21 = ssub.s32 %s15, 2
      %s22 = sadd.s32 %s15, 1
      %s23 = ssub.s32 %s15, %s22
      %p24 = scmp.eq.s32.totalorder %s23, 0
      %s26 = sadd.s32 %s25, 1
      %s27 = scalar_select %p24, %s25, %s26
      %p30 = pneg %p24
      %p31 = scmp.eq.s32.totalorder %s15, 1
      %p32 = por %p30, %p31
      %p33 = scmp.ne.s32.totalorder %s25, %s28
      %p34 = scmp.eq.s32.totalorder %s15, 0
      %p35 = por %p33, %p34
      %p36 = scmp.ne.s32.totalorder %s25, %s28
      %p37 = scmp.eq.s32.totalorder %s20, 1
      %p38 = por %p36, %p37
      %p39 = scmp.ne.s32.totalorder %s28, %s29
      %p40 = scmp.eq.s32.totalorder %s20, 0
      %p41 = por %p39, %p40
      %p42 = scmp.ne.s32.totalorder %s28, %s29
      %p43 = scmp.eq.s32.totalorder %s21, 1
      %p44 = por %p42, %p43
      %p46 = scmp.ne.s32.totalorder %s29, %s45
      %p47 = scmp.eq.s32.totalorder %s21, 0
      %p48 = por %p46, %p47
      %s50 = sadd.s32 %s49, 1
      %p53 = scmp.eq.s32.totalorder %s15, 1
      %p54 = scmp.ne.s32.totalorder %s49, %s51
      %p55 = scmp.eq.s32.totalorder %s15, 0
      %p56 = por %p54, %p55
      %p57 = scmp.ne.s32.totalorder %s49, %s51
      %p58 = scmp.eq.s32.totalorder %s20, 1
      %p59 = por %p57, %p58
      %p60 = scmp.ne.s32.totalorder %s51, %s52
      %p61 = scmp.eq.s32.totalorder %s20, 0
      %p62 = por %p60, %p61
      %p63 = scmp.ne.s32.totalorder %s51, %s52
      %p64 = scmp.eq.s32.totalorder %s21, 1
      %p65 = por %p63, %p64
      %p67 = scmp.ne.s32.totalorder %s52, %s66
      %p68 = scmp.eq.s32.totalorder %s21, 0
      %p69 = por %p67, %p68
      %s70 = ssub.s32 %s15, %s22
      %p71 = scmp.eq.s32.totalorder %s70, 0
      %s73 = sadd.s32 %s72, 1
      %s74 = scalar_select %p71, %s72, %s73
      %p77 = pneg %p71
      %p78 = scmp.eq.s32.totalorder %s15, 1
      %p79 = por %p77, %p78
      %p80 = scmp.ne.s32.totalorder %s72, %s75
      %p81 = scmp.eq.s32.totalorder %s15, 0
      %p82 = por %p80, %p81
      %p83 = scmp.ne.s32.totalorder %s72, %s75
      %p84 = scmp.eq.s32.totalorder %s20, 1
      %p85 = por %p83, %p84
      %p86 = scmp.ne.s32.totalorder %s75, %s76
      %p87 = scmp.eq.s32.totalorder %s20, 0
      %p88 = por %p86, %p87
      %p89 = scmp.ne.s32.totalorder %s75, %s76
      %p90 = scmp.eq.s32.totalorder %s21, 1
      %p91 = por %p89, %p90
      %p93 = scmp.ne.s32.totalorder %s76, %s92
      %p94 = scmp.eq.s32.totalorder %s21, 0
      %p95 = por %p93, %p94
      %p96 = scmp.le.s32.totalorder 1, %s15
      %p97 = scmp.lt.s32.totalorder %s15, 3
      %p98 = pnand %p96, %p97
      %p99 = pneg %p98
      // Predicated region
      $region9: #{tpu_custom_call.1} parent=5 // pred_check
        _
      $region10: #{tpu_custom_call.1} parent=5 // pred_check_branch
        %101 = sbr.rel (%p98) target = $region12
      $region11: #{tpu_custom_call.1} parent=5 // pred_region
        %s102 = ssub.s32 %s15, 1
        // Predicated region
        $region13: #{tpu_custom_call.1} parent=11 // pred_check
          %p103 = pneg %p62
        $region14: #{tpu_custom_call.1} parent=11 // pred_check_branch
          %105 = sbr.rel (%p103) target = $region16
        $region15: #{tpu_custom_call.1} parent=11 // pred_region
          %s107 = ssub.s32 2560, 2560
          %108 = vsyncadd [#allocation7], %s107
          %s109 = sshll.u32 [#allocation6], 4
          %s110 = int_to_ptr.vmem [resolvable:$true] %s109
          %115 = dma.hbm_to_vmem [thread:$0]  %s1, 2560, %s110, [#allocation7], 64, 64, 4
        $region16: #{tpu_custom_call.1} parent=11 // pred_fallthru
          _
      $region12: #{tpu_custom_call.1} parent=5 // pred_fallthru
        _
      %p116 = scmp.lt.s32.totalorder %s15, 2
      // Predicated region
      $region17: #{tpu_custom_call.1} parent=5 // pred_check
        %p117 = pneg %p116
      $region18: #{tpu_custom_call.1} parent=5 // pred_check_branch
        %119 = sbr.rel (%p117) target = $region20
      $region19: #{tpu_custom_call.1} parent=5 // pred_region
        // Predicated region
        $region21: #{tpu_custom_call.1} parent=19 // pred_check
          %p120 = pneg %p35
        $region22: #{tpu_custom_call.1} parent=19 // pred_check_branch
          %122 = sbr.rel (%p120) target = $region24
        $region23: #{tpu_custom_call.1} parent=19 // pred_region
          %s123 = sand.u32 %s25, 1
          %s124 = scalar_lea.sflag [#allocation4], %s123
          %s125 = sand.u32 %s25, 1
          %s126 = smul.addr %s125, 8
          %s127 = scalar_lea.vmem [#allocation3], %s126
          %s129 = ssub.s32 128, 128
          %130 = vsyncadd %s124, %s129
          %s131 = smul.addr %s15, 2
          %s132 = smul.addr %s131, 64
          %s133 = scalar_lea.hbm %s0, %s132
          %s134 = sshll.u32 %s127, 4
          %s135 = int_to_ptr.vmem [resolvable:$true] %s134
          %140 = dma.hbm_to_vmem [thread:$0]  %s133, 128, %s135, %s124, 64, 64, 4
        $region24: #{tpu_custom_call.1} parent=19 // pred_fallthru
          _
      $region20: #{tpu_custom_call.1} parent=5 // pred_fallthru
        _
      %p141 = scmp.le.s32.totalorder 1, %s15
      %p142 = scmp.lt.s32.totalorder %s15, 3
      %p143 = pnand %p141, %p142
      %p144 = pneg %p143
      // Predicated region
      $region25: #{tpu_custom_call.1} parent=5 // pred_check
        _
      $region26: #{tpu_custom_call.1} parent=5 // pred_check_branch
        %146 = sbr.rel (%p143) target = $region28
      $region27: #{tpu_custom_call.1} parent=5 // pred_region
        %s147 = ssub.s32 %s15, 1
        %s148 = sand.u32 %s28, 1
        %s149 = scalar_lea.sflag [#allocation4], %s148
        %s150 = sand.u32 %s28, 1
        %s151 = smul.addr %s150, 8
        %s152 = scalar_lea.vmem [#allocation3], %s151
        // Predicated region
        $region29: #{tpu_custom_call.1} parent=27 // pred_check
          %p153 = pneg %p41
        $region30: #{tpu_custom_call.1} parent=27 // pred_check_branch
          %155 = sbr.rel (%p153) target = $region32
        $region31: #{tpu_custom_call.1} parent=27 // pred_region
          %156 = dma.done %s149, 128
        $region32: #{tpu_custom_call.1} parent=27 // pred_fallthru
          _
        // Predicated region
        $region33: #{tpu_custom_call.1} parent=27 // pred_check
          %p157 = pneg %p62
        $region34: #{tpu_custom_call.1} parent=27 // pred_check_branch
          %159 = sbr.rel (%p157) target = $region36
        $region35: #{tpu_custom_call.1} parent=27 // pred_region
          %160 = dma.done [#allocation7], 2560
        $region36: #{tpu_custom_call.1} parent=27 // pred_fallthru
          _
        %s161 = sand.u32 %s28, 1
        %s162 = scalar_lea.sflag [#allocation4], %s161
        %s163 = sand.u32 %s28, 1
        %s164 = smul.addr %s163, 8
        %s165 = scalar_lea.vmem [#allocation3], %s164
        %p166 = pneg %p41
        %p167 = pneg %p38
        %p168 = pneg %p62
        %p169 = pneg %p59
        %p170 = pneg %p88
        %p171 = pneg %p85
        %s172 = sand.u32 %s75, 1
        %s173 = scalar_lea.sflag [#allocation5], %s172
        %s174 = sand.u32 %s75, 1
        %s175 = smul.addr %s174, 16
        %s176 = scalar_lea.vmem [#allocation8], %s175
        %vm178 = vcmask 516096
        %179 = vst.msk [vmem:[#allocation2] sm:$0x1] %vm178, 0
        %v180 = vld [vmem:[%s152] sm:$0xf]
        %v181 = vld [vmem:[%s152 + $0x4] sm:$0x7]
        %v184 = vunpack.c.l.b16 %v180
        %v185 = vunpack.c.l.b16 %v181
        %v186 = vpack.c.b16 %v185, %v184
        %v187 = vrot.slane %v186, 7
        %vm189 = vcmask 523265
        %190 = vst.msk [vmem:[#allocation2] sm:$0xfe] %vm189, %v187
        %vm191 = vcmask 1040896
        %vm192 = vsmask.f32 256
        %vm193 = vmand %vm191, %vm192
        %v194 = vld [vmem:[#allocation2] sm:$0x1]
        %v195 = vsel %vm193, 0, %v194
        %196 = vst [vmem:[#allocation2] sm:$0x1] %v195
        %v197 = vld [vmem:[%s152] sm:$0xf]
        %v198 = vld [vmem:[%s152 + $0x4] sm:$0xf]
        %v201 = vunpack.c.l.b16 %v197
        %v202 = vunpack.c.l.b16 %v198
        %v203 = vpack.c.b16 %v202, %v201
        %v205 = vshrl.u32 %v203, 16
        %v207 = vrot.slane %v205, 7
        %v208 = vshll.u32 %v203, 16
        %v210 = vor.u32 %v207, %v208
        %211 = vrot.lane.b32.xlu0 %v210, 64
        %v212 = vpop.permute.xlu0 %211
        %vm214 = vcmask 1048064
        %vm215 = vsmask.f32 7938
        %vm216 = vmand %vm214, %vm215
        %v217 = vld [vmem:[#allocation2] sm:$0xff]
        %v218 = vsel %vm216, %v212, %v217
        %219 = vst [vmem:[#allocation2] sm:$0xff] %v218
        %v220 = vld [vmem:[%s152] sm:$0xf]
        %v221 = vld [vmem:[%s152 + $0x4] sm:$0xf]
        %v224 = vunpack.c.l.b16 %v220
        %v225 = vunpack.c.l.b16 %v221
        %v226 = vpack.c.b16 %v225, %v224
        %vm228 = vcmask 523264
        %229 = vst.msk [vmem:[#allocation2 + $0x8] sm:$0xff] %vm228, %v226
        %vm230 = vcmask 1048071
        %vm231 = vsmask.f32 7966
        %vm232 = vmand %vm230, %vm231
        %v233 = vld [vmem:[#allocation2 + $0x8] sm:$0x80]
        %v234 = vsel %vm232, 0, %v233
        %235 = vst [vmem:[#allocation2 + $0x8] sm:$0x80] %v234
        %v236 = vld [vmem:[%s152] sm:$0xf]
        %v237 = vld [vmem:[%s152 + $0x4] sm:$0xf]
        %v240 = vunpack.c.l.b16 %v236
        %v241 = vunpack.c.l.b16 %v237
        %v242 = vpack.c.b16 %v241, %v240
        %v244 = vshrl.u32 %v242, 16
        %v246 = vshll.u32 %v242, 16
        %v248 = vrot.slane %v246, 1
        %v249 = vor.u32 %v244, %v248
        %250 = vrot.lane.b32.xlu0 %v249, 64
        %v251 = vpop.permute.xlu0 %250
        %vm253 = vsmask.f32 7424
        %vm254 = vmand %vm214, %vm253
        %v255 = vld [vmem:[#allocation2 + $0x8] sm:$0xff]
        %v256 = vsel %vm254, %v251, %v255
        %257 = vst [vmem:[#allocation2 + $0x8] sm:$0xff] %v256
        %vm258 = vcmask 523271
        %259 = vst.msk [vmem:[#allocation2 + $0x10] sm:$0x80] %vm258, 0
        %v260 = vld [vmem:[%s152] sm:$0xe]
        %v261 = vld [vmem:[%s152 + $0x4] sm:$0xf]
        %v264 = vunpack.c.l.b16 %v260
        %v265 = vunpack.c.l.b16 %v261
        %v266 = vpack.c.b16 %v265, %v264
        %v267 = vrot.slane %v266, 1
        %vm269 = vcmask 522240
        %270 = vst.msk [vmem:[#allocation2 + $0x10] sm:$0x7f] %vm269, %v267
        %v271 = vld [vmem:[#allocation2] sm:$0xff]
        %v272 = vld [vmem:[#allocation2 + $0x8] sm:$0xff]
        %v273 = vld [vmem:[#allocation2 + $0x10] sm:$0xff]
        %v274 = vld [vmem:[#allocation6] sm:$0xf]
        %v275 = vld [vmem:[#allocation6 + $0x4] sm:$0xf]
        %v276 = vld [vmem:[#allocation6 + $0x8] sm:$0xf]
        %v277 = vld [vmem:[#allocation6 + $0xc] sm:$0xf]
        %v278 = vld [vmem:[#allocation6 + $0x10] sm:$0xf]
        %v279 = vld [vmem:[#allocation6 + $0x14] sm:$0xf]
        %v280 = vld [vmem:[#allocation6 + $0x18] sm:$0xf]
        %v281 = vld [vmem:[#allocation6 + $0x1c] sm:$0xf]
        %v282 = vld [vmem:[#allocation6 + $0x20] sm:$0xf]
        %v283 = vld [vmem:[#allocation6 + $0x24] sm:$0xf]
        %v284 = vld [vmem:[#allocation6 + $0x28] sm:$0xf]
        %v285 = vld [vmem:[#allocation6 + $0x2c] sm:$0xf]
        %v286 = vld [vmem:[#allocation6 + $0x30] sm:$0xf]
        %v287 = vld [vmem:[#allocation6 + $0x34] sm:$0xf]
        %v288 = vld [vmem:[#allocation6 + $0x38] sm:$0xf]
        %v289 = vld [vmem:[#allocation6 + $0x3c] sm:$0xf]
        %v290 = vld [vmem:[#allocation6 + $0x40] sm:$0xf]
        %v291 = vld [vmem:[#allocation6 + $0x44] sm:$0xf]
        %v292 = vld [vmem:[#allocation6 + $0x48] sm:$0xf]
        %v293 = vld [vmem:[#allocation6 + $0x4c] sm:$0xf]
        %v294 = vld [vmem:[#allocation6 + $0x50] sm:$0xf]
        %v295 = vld [vmem:[#allocation6 + $0x54] sm:$0xf]
        %v296 = vld [vmem:[#allocation6 + $0x58] sm:$0xf]
        %v297 = vld [vmem:[#allocation6 + $0x5c] sm:$0xf]
        %v298 = vld [vmem:[#allocation6 + $0x60] sm:$0xf]
        %v299 = vld [vmem:[#allocation6 + $0x64] sm:$0xf]
        %v300 = vld [vmem:[#allocation6 + $0x68] sm:$0xf]
        %v301 = vld [vmem:[#allocation6 + $0x6c] sm:$0xf]
        %v302 = vld [vmem:[#allocation6 + $0x70] sm:$0xf]
        %v303 = vld [vmem:[#allocation6 + $0x74] sm:$0xf]
        %v304 = vld [vmem:[#allocation6 + $0x78] sm:$0xf]
        %v305 = vld [vmem:[#allocation6 + $0x7c] sm:$0xf]
        %v306 = vld [vmem:[#allocation6 + $0x80] sm:$0xf]
        %v307 = vld [vmem:[#allocation6 + $0x84] sm:$0xf]
        %v308 = vld [vmem:[#allocation6 + $0x88] sm:$0xf]
        %v309 = vld [vmem:[#allocation6 + $0x8c] sm:$0xf]
        %v310 = vld [vmem:[#allocation6 + $0x90] sm:$0xf]
        %v311 = vld [vmem:[#allocation6 + $0x94] sm:$0xf]
        %v312 = vld [vmem:[#allocation6 + $0x98] sm:$0xf]
        %v313 = vld [vmem:[#allocation6 + $0x9c] sm:$0xf]
        %v354 = vunpack.c.l.b16 %v274
        %v355 = vunpack.c.l.b16 %v275
        %v356 = vunpack.c.l.b16 %v276
        %v357 = vunpack.c.l.b16 %v277
        %v358 = vunpack.c.l.b16 %v278
        %v359 = vunpack.c.l.b16 %v279
        %v360 = vunpack.c.l.b16 %v280
        %v361 = vunpack.c.l.b16 %v281
        %v362 = vunpack.c.l.b16 %v282
        %v363 = vunpack.c.l.b16 %v283
        %v364 = vunpack.c.l.b16 %v284
        %v365 = vunpack.c.l.b16 %v285
        %v366 = vunpack.c.l.b16 %v286
        %v367 = vunpack.c.l.b16 %v287
        %v368 = vunpack.c.l.b16 %v288
        %v369 = vunpack.c.l.b16 %v289
        %v370 = vunpack.c.l.b16 %v290
        %v371 = vunpack.c.l.b16 %v291
        %v372 = vunpack.c.l.b16 %v292
        %v373 = vunpack.c.l.b16 %v293
        %v374 = vunpack.c.l.b16 %v294
        %v375 = vunpack.c.l.b16 %v295
        %v376 = vunpack.c.l.b16 %v296
        %v377 = vunpack.c.l.b16 %v297
        %v378 = vunpack.c.l.b16 %v298
        %v379 = vunpack.c.l.b16 %v299
        %v380 = vunpack.c.l.b16 %v300
        %v381 = vunpack.c.l.b16 %v301
        %v382 = vunpack.c.l.b16 %v302
        %v383 = vunpack.c.l.b16 %v303
        %v384 = vunpack.c.l.b16 %v304
        %v385 = vunpack.c.l.b16 %v305
        %v386 = vunpack.c.l.b16 %v306
        %v387 = vunpack.c.l.b16 %v307
        %v388 = vunpack.c.l.b16 %v308
        %v389 = vunpack.c.l.b16 %v309
        %v390 = vunpack.c.l.b16 %v310
        %v391 = vunpack.c.l.b16 %v311
        %v392 = vunpack.c.l.b16 %v312
        %v393 = vunpack.c.l.b16 %v313
        %v394 = vpack.c.b16 %v355, %v354
        %v395 = vpack.c.b16 %v357, %v356
        %v396 = vpack.c.b16 %v359, %v358
        %v397 = vpack.c.b16 %v361, %v360
        %v398 = vpack.c.b16 %v363, %v362
        %v399 = vpack.c.b16 %v365, %v364
        %v400 = vpack.c.b16 %v367, %v366
        %v401 = vpack.c.b16 %v369, %v368
        %v402 = vpack.c.b16 %v371, %v370
        %v403 = vpack.c.b16 %v373, %v372
        %v404 = vpack.c.b16 %v375, %v374
        %v405 = vpack.c.b16 %v377, %v376
        %v406 = vpack.c.b16 %v379, %v378
        %v407 = vpack.c.b16 %v381, %v380
        %v408 = vpack.c.b16 %v383, %v382
        %v409 = vpack.c.b16 %v385, %v384
        %v410 = vpack.c.b16 %v387, %v386
        %v411 = vpack.c.b16 %v389, %v388
        %v412 = vpack.c.b16 %v391, %v390
        %v413 = vpack.c.b16 %v393, %v392
        %v435 = vsel %vm228, %v273, 0
        %437 = vmatprep.subr.bf16.mxu0 0
        %438 = vmatpush1.bf16.msra.mxu0 %v394
        %439 = vmatprep.subr.bf16.mxu0 0
        %440 = vmatpush1.bf16.msra.mxu0 %v395
        %441 = vmatprep.subr.bf16.mxu0 0
        %442 = vmatpush1.bf16.msra.mxu0 %v396
        %443 = vmatprep.subr.bf16.mxu0 0
        %444 = vmatpush1.bf16.msra.mxu0 %v397
        %445 = vmatprep.subr.bf16.mxu0 0
        %446 = vmatpush1.bf16.msra.mxu0 %v398
        %447 = vmatprep.subr.bf16.mxu0 0
        %448 = vmatpush1.bf16.msra.mxu0 %v399
        %449 = vmatprep.subr.bf16.mxu0 0
        %450 = vmatpush1.bf16.msra.mxu0 %v400
        %451 = vmatprep.subr.bf16.mxu0 0
        %452 = vmatpush1.bf16.msra.mxu0 %v401
        %453 = vmatprep.subr.bf16.mxu0 0
        %454 = vmatpush1.bf16.msra.mxu0 %v402
        %455 = vmatprep.subr.bf16.mxu0 0
        %456 = vmatpush1.bf16.msra.mxu0 %v403
        %457 = vmatprep.subr.bf16.mxu0 0
        %458 = vmatpush1.bf16.msra.mxu0 %v404
        %459 = vmatprep.subr.bf16.mxu0 0
        %460 = vmatpush1.bf16.msra.mxu0 %v405
        %461 = vmatprep.subr.bf16.mxu0 0
        %462 = vmatpush1.bf16.msra.mxu0 %v406
        %463 = vmatprep.subr.bf16.mxu0 0
        %464 = vmatpush1.bf16.msra.mxu0 %v407
        %465 = vmatprep.subr.bf16.mxu0 0
        %466 = vmatpush1.bf16.msra.mxu0 %v408
        %467 = vmatprep.subr.bf16.mxu0 0
        %468 = vmatpush1.bf16.msra.mxu0 %v409
        %469 = vmatprep.mubr.bf16.mxu0 %v272
        %470 = vmatmul.mubr.bf16.gmra.mrb[0].mxu0 %v271
        %v471 = vpop.f32.mrb[0].mxu0
        %v472 = vadd.f32 0.0, %v471
        %v473 = vpop.f32.mrb[0].mxu0
        %v474 = vpop.f32.mrb[0].mxu0
        %v475 = vadd.f32 0.0, %v474
        %v476 = vpop.f32.mrb[0].mxu0
        %477 = vdwg.mxu0
        %478 = vmatprep.subr.bf16.mxu0 0
        %479 = vmatpush1.bf16.msra.mxu0 %v410
        %480 = vmatprep.subr.bf16.mxu0 0
        %481 = vmatpush1.bf16.msra.mxu0 %v411
        %482 = vmatprep.subr.bf16.mxu0 0
        %483 = vmatpush1.bf16.msra.mxu0 %v412
        %484 = vmatprep.subr.bf16.mxu0 0
        %485 = vmatpush1.bf16.msra.mxu0 %v413
        %486 = vmatprep.subr.bf16.mxu0 0
        %487 = vmatpush1.bf16.msra.mxu0 0
        %488 = vmatprep.subr.bf16.mxu0 0
        %489 = vmatpush1.bf16.msra.mxu0 0
        %490 = vmatprep.subr.bf16.mxu0 0
        %491 = vmatpush1.bf16.msra.mxu0 0
        %492 = vmatprep.subr.bf16.mxu0 0
        %493 = vmatpush1.bf16.msra.mxu0 0
        %494 = vmatprep.subr.bf16.mxu0 0
        %495 = vmatpush1.bf16.msra.mxu0 0
        %496 = vmatprep.subr.bf16.mxu0 0
        %497 = vmatpush1.bf16.msra.mxu0 0
        %498 = vmatprep.subr.bf16.mxu0 0
        %499 = vmatpush1.bf16.msra.mxu0 0
        %500 = vmatprep.subr.bf16.mxu0 0
        %501 = vmatpush1.bf16.msra.mxu0 0
        %502 = vmatprep.subr.bf16.mxu0 0
        %503 = vmatpush1.bf16.msra.mxu0 0
        %504 = vmatprep.subr.bf16.mxu0 0
        %505 = vmatpush1.bf16.msra.mxu0 0
        %506 = vmatprep.subr.bf16.mxu0 0
        %507 = vmatpush1.bf16.msra.mxu0 0
        %508 = vmatprep.subr.bf16.mxu0 0
        %509 = vmatpush1.bf16.msra.mxu0 0
        %510 = vmatprep.mubr.bf16.mxu0 0
        %511 = vmatmul.mubr.bf16.gmra.mrb[0].mxu0 %v435
        %v512 = vpop.f32.mrb[0].mxu0
        %v513 = vadd.f32 %v472, %v512
        %v514 = vpop.f32.mrb[0].mxu0
        %v515 = vpop.f32.mrb[0].mxu0
        %v516 = vadd.f32 %v475, %v515
        %v517 = vpop.f32.mrb[0].mxu0
        %518 = vdwg.mxu0
        %519 = vst [vmem:[%s176] sm:$0xff] %v513
        %520 = vst [vmem:[%s176 + $0x8] sm:$0xff] %v516
        %s521 = sand.u32 %s75, 1
        %s522 = scalar_lea.sflag [#allocation5], %s521
        %s523 = sand.u32 %s75, 1
        %s524 = smul.addr %s523, 16
        %s525 = scalar_lea.vmem [#allocation8], %s524
        // Predicated region
        $region37: #{tpu_custom_call.1} parent=27 // pred_check
          %p526 = pneg %p85
        $region38: #{tpu_custom_call.1} parent=27 // pred_check_branch
          %528 = sbr.rel (%p526) target = $region40
        $region39: #{tpu_custom_call.1} parent=27 // pred_region
          %s530 = ssub.s32 256, 256
          %531 = vsyncadd %s522, %s530
          %s532 = smul.addr %s20, 2
          %s533 = smul.addr %s532, 128
          %s534 = scalar_lea.hbm %s2, %s533
          %s535 = sshll.u32 %s525, 4
          %s536 = int_to_ptr.vmem [resolvable:$true] %s535
          %541 = dma.vmem_to_hbm [thread:$0]  %s536, 256, %s534, %s522, 128, 128, 8
        $region40: #{tpu_custom_call.1} parent=27 // pred_fallthru
          _
      $region28: #{tpu_custom_call.1} parent=5 // pred_fallthru
        _
      %p542 = scmp.le.s32.totalorder 2, %s15
      // Predicated region
      $region41: #{tpu_custom_call.1} parent=5 // pred_check
        %p543 = pneg %p542
      $region42: #{tpu_custom_call.1} parent=5 // pred_check_branch
        %545 = sbr.rel (%p543) target = $region44
      $region43: #{tpu_custom_call.1} parent=5 // pred_region
        %s546 = ssub.s32 %s15, 2
        // Predicated region
        $region45: #{tpu_custom_call.1} parent=43 // pred_check
          %p547 = pneg %p91
        $region46: #{tpu_custom_call.1} parent=43 // pred_check_branch
          %549 = sbr.rel (%p547) target = $region48
        $region47: #{tpu_custom_call.1} parent=43 // pred_region
          %s550 = sand.u32 %s76, 1
          %s551 = scalar_lea.sflag [#allocation5], %s550
          %s552 = sand.u32 %s76, 1
          %s553 = smul.addr %s552, 16
          %s554 = scalar_lea.vmem [#allocation8], %s553
          %555 = dma.done %s551, 256
        $region48: #{tpu_custom_call.1} parent=43 // pred_fallthru
          _
      $region44: #{tpu_custom_call.1} parent=5 // pred_fallthru
        _
    $region6: #{tpu_custom_call.1} parent=1 // loop_footer
      %s19 = sadd.s32 1, %s15
    $region7: #{tpu_custom_call.1} parent=1 // loop_footer_branch
      %14 = sbr.rel target = $region3
    $region8: #{tpu_custom_call.1} parent=1 // loop_exit
      _
    %556 = vsyncpa [#allocation4], 1
    %s557 = scalar_lea.sflag [#allocation4], 1
    %558 = vsyncpa %s557, 1
    %559 = vsyncpa [#allocation7], 1
    %560 = vsyncpa [#allocation5], 1
    %s561 = scalar_lea.sflag [#allocation5], 1
    %562 = vsyncpa %s561, 1

</llo_original>
